<compile_context>
chip_gen: v5e
topology: v5e:2x2
jax: 0.10.0
libtpu: 0.0.40
codegen_flags: <defaults>
</compile_context>

<pallas_src>
import functools

import jax
import jax.numpy as jnp
from jax.experimental import pallas as pl
from jax.experimental.pallas import tpu as pltpu

IN_FEATURES = 100
OUT_FEATURES = 8
VOCAB = 100  # embedding table rows
TM_CAP = 2048  # max rows per tile (0.8 MiB x-buffer; safe on v5e/v6e/v7x)


def _linear_posenc_kernel(x_ref, w_ref, add_ref, o_ref):
    # x_ref:   (TM, 100)  VMEM  -- row tile of flattened (B*S, 100) input
    # w_ref:   (100, 8)   VMEM  -- weight, already transposed (x @ w)
    # add_ref: (TM, 8)    VMEM  -- bias + positional encoding, per row
    # o_ref:   (TM, 8)    VMEM
    y = jnp.dot(x_ref[...], w_ref[...], preferred_element_type=jnp.float32)
    o_ref[...] = (y + add_ref[...]).astype(o_ref.dtype)
    # TODO(synk): output last dim is 8 (<128 lanes) -> masked stores; a
    # lane-dense (8, rows) layout would remove vst.msk pressure but the
    # writeback is ~8% of total traffic, so kept simple/robust here.


def linear_with_pos_encoding(x, weight, bias, pos_table):
    """x: (B, S, 100) f32; weight: (8, 100); bias: (8,); pos_table: (100, 8)."""
    B, S, K = x.shape
    assert K == IN_FEATURES
    assert S <= VOCAB, "positional encoding only covers sequence length <= 100"

    rows = B * S
    # Row tile: multiple of 8 sublanes, capped so double-buffered inputs stay
    # far below the scoped VMEM limit on every generation (incl. v7x 64 MiB).
    tm = min(TM_CAP, ((rows + 7) // 8) * 8)
    num_tiles = pl.cdiv(rows, tm)
    rows_padded = num_tiles * tm

    # Flatten to a clean 2-D matmul (TM, 100) @ (100, 8): keeps the MXU fed
    # with full-height passes instead of an M=8 batched matmul.
    x2 = x.reshape(rows, IN_FEATURES)
    w_t = weight.T                                    # (100, 8)
    # Fold bias into the positional table; replicate per batch so row b*S+s
    # picks up emb[s] + bias.
    add2 = jnp.tile(pos_table[:S] + bias[None, :], (B, 1))  # (B*S, 8)

    if rows_padded != rows:
        pad = rows_padded - rows
        x2 = jnp.pad(x2, ((0, pad), (0, 0)))
        add2 = jnp.pad(add2, ((0, pad), (0, 0)))

    out_shape = jax.ShapeDtypeStruct((rows_padded, OUT_FEATURES), x.dtype)

    cost = pl.CostEstimate(
        flops=2 * rows_padded * IN_FEATURES * OUT_FEATURES,
        transcendentals=0,
        bytes_accessed=(rows_padded * IN_FEATURES * 4
                        + IN_FEATURES * OUT_FEATURES * 4
                        + 2 * rows_padded * OUT_FEATURES * 4),
    )

    out = pl.pallas_call(
        _linear_posenc_kernel,
        out_shape=out_shape,
        grid=(num_tiles,),
        in_specs=[
            pl.BlockSpec((tm, IN_FEATURES), lambda i: (i, 0)),
            pl.BlockSpec((IN_FEATURES, OUT_FEATURES), lambda i: (0, 0)),
            pl.BlockSpec((tm, OUT_FEATURES), lambda i: (i, 0)),
        ],
        out_specs=pl.BlockSpec((tm, OUT_FEATURES), lambda i: (i, 0)),
        compiler_params=pltpu.CompilerParams(
            dimension_semantics=("parallel",),
            vmem_limit_bytes=32 * 1024 * 1024,
        ),
        cost_estimate=cost,
    )(x2, w_t, add2)

    return out[:rows].reshape(B, S, OUT_FEATURES)


def _reference(x, weight, bias, pos_table):
    y = jnp.einsum("bsk,nk->bsn", x, weight) + bias
    pos = pos_table[jnp.arange(x.shape[1])][None]
    return y + pos


if __name__ == "__main__":
    key = jax.random.PRNGKey(0)
    k_x, k_w, k_b, k_e = jax.random.split(key, 4)

    B, S = 2, 8
    x = jax.random.normal(k_x, (B, S, IN_FEATURES), dtype=jnp.float32)

    # Deterministic parameter init (synthetic; mimics nn.Linear / nn.Embedding shapes)
    bound = 1.0 / (IN_FEATURES ** 0.5)
    weight = jax.random.uniform(
        k_w, (OUT_FEATURES, IN_FEATURES), minval=-bound, maxval=bound,
        dtype=jnp.float32)
    bias = jax.random.uniform(
        k_b, (OUT_FEATURES,), minval=-bound, maxval=bound, dtype=jnp.float32)
    pos_table = jax.random.normal(k_e, (VOCAB, OUT_FEATURES), dtype=jnp.float32)

    fn = jax.jit(linear_with_pos_encoding)
    out = fn(x, weight, bias, pos_table)
    out = jax.block_until_ready(out)

    ref = _reference(x, weight, bias, pos_table)
    assert out.shape == (B, S, OUT_FEATURES)
    assert jnp.allclose(out, ref, atol=1e-5, rtol=1e-5)

    print("KERNEL_OK")
</pallas_src>

<mosaic_0001>
module attributes {stable_mosaic.version = 11 : i64} {
  func.func @_linear_posenc_kernel(%arg0: i32, %arg1: memref<16x100xf32, #tpu.memory_space<vmem>>, %arg2: memref<100x8xf32, #tpu.memory_space<vmem>>, %arg3: memref<16x8xf32, #tpu.memory_space<vmem>>, %arg4: memref<16x8xf32, #tpu.memory_space<vmem>>) attributes {dimension_semantics = [#tpu.dimension_semantics<parallel>], iteration_bounds = array<i64: 1>, scalar_prefetch = 0 : i64, scratch_operands = 0 : i64, tpu.core_type = #tpu.core_type<tc>, window_params = [{transform_indices = @transform_0, window_bounds = array<i64: 16, 100>}, {pipeline_mode = #tpu.pipeline_mode<synchronous>, transform_indices = @transform_1, window_bounds = array<i64: 100, 8>}, {transform_indices = @transform_2, window_bounds = array<i64: 16, 8>}, {transform_indices = @transform_3, window_bounds = array<i64: 16, 8>}]} {
    %c0 = arith.constant 0 : index
    %c0_0 = arith.constant 0 : index
    %0 = vector.load %arg1[%c0, %c0_0] : memref<16x100xf32, #tpu.memory_space<vmem>>, vector<16x100xf32>
    %c0_1 = arith.constant 0 : index
    %c0_2 = arith.constant 0 : index
    %1 = vector.load %arg2[%c0_1, %c0_2] : memref<100x8xf32, #tpu.memory_space<vmem>>, vector<100x8xf32>
    %cst = arith.constant dense<0.000000e+00> : vector<16x8xf32>
    %2 = tpu.matmul %0, %1, %cst {dimension_numbers = #tpu.dot_dimension_numbers<[1], [0], [0], [1], [0, 0, 1, 1], [], []>} : vector<16x100xf32>, vector<100x8xf32>, vector<16x8xf32> -> vector<16x8xf32>
    %c0_3 = arith.constant 0 : index
    %c0_4 = arith.constant 0 : index
    %3 = vector.load %arg3[%c0_3, %c0_4] : memref<16x8xf32, #tpu.memory_space<vmem>>, vector<16x8xf32>
    %4 = arith.addf %2, %3 : vector<16x8xf32>
    %c0_5 = arith.constant 0 : index
    %c0_6 = arith.constant 0 : index
    %5 = vector.load %arg4[%c0_5, %c0_6] : memref<16x8xf32, #tpu.memory_space<vmem>>, vector<16x8xf32>
    tpu.vector_store %arg4[%c0_5, %c0_6], %4 {strides = array<i32>} : memref<16x8xf32, #tpu.memory_space<vmem>>, vector<16x8xf32>,
    return
  }
  func.func @transform_0(%arg0: i32) -> (i32, i32) {
    %c0_i32 = arith.constant 0 : i32
    %c0_i32_0 = arith.constant 0 : i32
    return %arg0, %c0_i32 : i32, i32
  }
  func.func @transform_1(%arg0: i32) -> (i32, i32) {
    %c0_i32 = arith.constant 0 : i32
    %c0_i32_0 = arith.constant 0 : i32
    %c0_i32_1 = arith.constant 0 : i32
    return %c0_i32, %c0_i32_0 : i32, i32
  }
  func.func @transform_2(%arg0: i32) -> (i32, i32) {
    %c0_i32 = arith.constant 0 : i32
    %c0_i32_0 = arith.constant 0 : i32
    return %arg0, %c0_i32 : i32, i32
  }
  func.func @transform_3(%arg0: i32) -> (i32, i32) {
    %c0_i32 = arith.constant 0 : i32
    %c0_i32_0 = arith.constant 0 : i32
    return %arg0, %c0_i32 : i32, i32
  }
}

</mosaic_0001>

<llo_original>
// kernel: linear_with_pos_encoding.1
$region0: #{linear_with_pos_encoding.1}
  #allocation0 [shape = 'u32[]', space=smem, size = 0x4, offset = 0x4, fixed_abs, tag = 'smem constant byte address 0x4 - core index']
  #allocation1 [shape = 'u32[72,128]{1,0:T(1,128)}', space=vmem, size = 0x9000, scoped, tag = 'internal scratch']
  %s0 = inlined_call_operand.vmem [shape: f32[16,100], index: 0, kind: input, shape index: {}]
  %s1 = inlined_call_operand.vmem [shape: f32[100,8], index: 1, kind: input, shape index: {}]
  %s2 = inlined_call_operand.vmem [shape: f32[16,8], index: 2, kind: input, shape index: {}]
  %s3 = inlined_call_operand.hbm [shape: f32[16,8], index: 3, kind: output, shape index: {}]
  %s4 = sld [smem:[#allocation0]]
  $region22: #{linear_with_pos_encoding.1} parent=0
    _
  %s6 = ssub.s32 1, %s4
  %s7 = scalar_select 0, %s6, %s4
  $region1: #{linear_with_pos_encoding.1} parent=0
    #allocation2 [shape = 'u8[8192]{0}', space=vmem, size = 0x2000, scoped, tag = 'output window, operand 0, single buffered']
    #allocation3 [shape = 's32[1]{0}', space=sflag, size = 0x4, scoped, tag = 'scoped memory for linear_with_pos_encoding.1']
    %8 = vsyncpa [#allocation3], 0
    // Predicated region
    $region2: #{linear_with_pos_encoding.1} parent=1 // pred_check
      _
    $region3: #{linear_with_pos_encoding.1} parent=1 // pred_check_branch
      %10 = sbr.rel (0) target = $region5
    $region4: #{linear_with_pos_encoding.1} parent=1 // pred_region
      _
    $region5: #{linear_with_pos_encoding.1} parent=1 // pred_fallthru
      _
    // Predicated region
    $region6: #{linear_with_pos_encoding.1} parent=1 // pred_check
      _
    $region7: #{linear_with_pos_encoding.1} parent=1 // pred_check_branch
      %12 = sbr.rel (0) target = $region9
    $region8: #{linear_with_pos_encoding.1} parent=1 // pred_region
      _
    $region9: #{linear_with_pos_encoding.1} parent=1 // pred_fallthru
      _
    // Predicated region
    $region10: #{linear_with_pos_encoding.1} parent=1 // pred_check
      _
    $region11: #{linear_with_pos_encoding.1} parent=1 // pred_check_branch
      %14 = sbr.rel (0) target = $region13
    $region12: #{linear_with_pos_encoding.1} parent=1 // pred_region
      _
    $region13: #{linear_with_pos_encoding.1} parent=1 // pred_fallthru
      _
    %v15 = vld [vmem:[%s0] sm:$0xff]
    %v16 = vld [vmem:[%s0 + $0x8] sm:$0xff]
    %v17 = vld [vmem:[%s1] sm:$0xff]
    %v18 = vld [vmem:[%s1 + $0x8] sm:$0xff]
    %v19 = vld [vmem:[%s1 + $0x10] sm:$0xff]
    %v20 = vld [vmem:[%s1 + $0x18] sm:$0xff]
    %v21 = vld [vmem:[%s1 + $0x20] sm:$0xff]
    %v22 = vld [vmem:[%s1 + $0x28] sm:$0xff]
    %v23 = vld [vmem:[%s1 + $0x30] sm:$0xff]
    %v24 = vld [vmem:[%s1 + $0x38] sm:$0xff]
    %v25 = vld [vmem:[%s1 + $0x40] sm:$0xff]
    %v26 = vld [vmem:[%s1 + $0x48] sm:$0xff]
    %v27 = vld [vmem:[%s1 + $0x50] sm:$0xff]
    %v28 = vld [vmem:[%s1 + $0x58] sm:$0xff]
    %v29 = vld [vmem:[%s1 + $0x60] sm:$0xf]
    %v30 = vld [vmem:[%s2] sm:$0xff]
    %v31 = vld [vmem:[%s2 + $0x8] sm:$0xff]
    %vm32 = vcmask 818176
    %v34 = vsel %vm32, %v15, 0
    %v37 = vsel %vm32, %v16, 0
    %vm39 = vcmask 1043456
    %v41 = vsel %vm39, %v29, 0
    %43 = vmatpush.msra.mxu0 0.0
    %44 = vmatpush.msra.mxu0 0.0
    %45 = vmatpush.msra.mxu0 0.0
    %46 = vmatpush.msra.mxu0 %v41
    %47 = vmatpush.msra.mxu0 %v28
    %48 = vmatpush.msra.mxu0 %v27
    %49 = vmatpush.msra.mxu0 %v26
    %50 = vmatpush.msra.mxu0 %v25
    %51 = vmatpush.msra.mxu0 %v24
    %52 = vmatpush.msra.mxu0 %v23
    %53 = vmatpush.msra.mxu0 %v22
    %54 = vmatpush.msra.mxu0 %v21
    %55 = vmatpush.msra.mxu0 %v20
    %56 = vmatpush.msra.mxu0 %v19
    %57 = vmatpush.msra.mxu0 %v18
    %58 = vmatpush.msra.mxu0 %v17
    %59 = vmatmul.f32.gmra.mxu0 %v34
    %v60 = vpop.f32.mrf.mxu0
    %v61 = vadd.f32 %v30, %v60
    %62 = vmatmul.f32.gmra.mxu0 %v37
    %v63 = vpop.f32.mrf.mxu0
    %v64 = vadd.f32 %v31, %v63
    %65 = vdwg.mxu0
    %vm66 = vcmask 64512
    %67 = vst.msk [vmem:[#allocation2] sm:$0xff] %vm66, %v61
    %68 = vst.msk [vmem:[#allocation2 + $0x8] sm:$0xff] %vm66, %v64
    // Predicated region
    $region14: #{linear_with_pos_encoding.1} parent=1 // pred_check
      _
    $region15: #{linear_with_pos_encoding.1} parent=1 // pred_check_branch
      %70 = sbr.rel (0) target = $region17
    $region16: #{linear_with_pos_encoding.1} parent=1 // pred_region
      %72 = vsyncadd [#allocation3], 0
      %s73 = sshll.u32 [#allocation2], 4
      %s74 = int_to_ptr.vmem [resolvable:$true] %s73
      %s75 = sshll.u32 %s3, 4
      %s76 = int_to_ptr.hbm [resolvable:$true] %s75
      %81 = dma.vmem_to_hbm [thread:$0]  %s74, 256, %s76, [#allocation3], 128, 128, 8
    $region17: #{linear_with_pos_encoding.1} parent=1 // pred_fallthru
      _
    // Predicated region
    $region18: #{linear_with_pos_encoding.1} parent=1 // pred_check
      _
    $region19: #{linear_with_pos_encoding.1} parent=1 // pred_check_branch
      %83 = sbr.rel (0) target = $region21
    $region20: #{linear_with_pos_encoding.1} parent=1 // pred_region
      %85 = dma.done [#allocation3], 256
    $region21: #{linear_with_pos_encoding.1} parent=1 // pred_fallthru
      _
    %86 = vsyncpa [#allocation3], 1

</llo_original>
